<compile_context>
chip_gen: v6e
topology: v6e:2x2x1
jax: 0.10.0
libtpu: 0.0.40
codegen_flags: <defaults>
</compile_context>

<pallas_src>
import functools

import jax
import jax.numpy as jnp
from jax.experimental import pallas as pl
from jax.experimental.pallas import tpu as pltpu


# 32 MiB scoped VMEM: >= default on v6e/v7x, raises v5e's 16 MiB default, and
# stays well inside v7x's 64 MiB physical VMEM.
_VMEM_LIMIT_BYTES = 32 * 1024 * 1024


def _round_down(x, m):
    return max(m, (x // m) * m)


def _token_tile(n_tokens, hidden, itemsize=4,
                target_tile_bytes=8 * 1024 * 1024, max_tile=1024):
    """Token-axis tile for the router matmul.

    Sized so that the double-buffered x tile (2 * TN * H * itemsize) plus the
    resident weight and the small output tiles stay comfortably under the
    32 MiB scoped-VMEM limit on every TPU generation (v5e/v6e/v7x)."""
    if n_tokens <= max_tile:
        return n_tokens                       # full-extent block (always legal)
    tn = target_tile_bytes // max(1, hidden * itemsize)
    tn = min(max_tile, max(128, tn))
    return _round_down(tn, 128)


def _assign_tile(n_tokens, max_tile=2048):
    """Lane-axis (token) tile for the assignment kernel ([E, N] layout)."""
    if n_tokens <= max_tile:
        return n_tokens                       # full-extent block
    return _round_down(max_tile, 128)


# ---------------------------------------------------------------------------
# Kernel 1: router matmul + softmax, tiled over tokens.
# ---------------------------------------------------------------------------
def _router_kernel(x_ref, w_ref, logits_ref, probs_ref):
    # logits = x_tile @ W   (MXU, f32 accumulate)
    logits = jnp.dot(x_ref[...], w_ref[...], preferred_element_type=jnp.float32)
    logits_ref[...] = logits.astype(logits_ref.dtype)
    # softmax over the expert axis (last dim), all math in f32
    m = jnp.max(logits, axis=-1, keepdims=True)
    e = jnp.exp(logits - m)
    s = jnp.sum(e, axis=-1, keepdims=True)
    # one reciprocal per token instead of E divides (exact, keeps probs
    # matching the reference softmax up to normal f32 rounding)
    probs_ref[...] = (e * pl.reciprocal(s, approx=False)).astype(probs_ref.dtype)


# ---------------------------------------------------------------------------
# Kernel 2: token -> expert assignment, expert-major [E, N] layout.
# ---------------------------------------------------------------------------
def _assign_kernel(probs_t_ref, mask_ref, score_ref, idx_ref):
    probs = probs_t_ref[...]                  # (E, TA) f32 router probs (transposed)
    selected = mask_ref[...] != 0             # (E, TA) bool: expert e picked token n
    neg_inf = jnp.full_like(probs, -jnp.inf)
    masked = jnp.where(selected, probs, neg_inf)
    any_sel = jnp.any(selected, axis=0, keepdims=True)        # (1, TA)
    # tokens nobody picked fall back to plain argmax over router_probs
    eff = jnp.where(any_sel, masked, probs)                    # (E, TA)
    best = jnp.max(eff, axis=0, keepdims=True)                 # (1, TA)
    n_exp = probs.shape[0]
    exp_iota = jax.lax.broadcasted_iota(jnp.int32, probs.shape, 0)
    # smallest expert index achieving the max -> matches the torch loop's
    # "replace only if strictly greater / earlier expert wins" tie-breaking.
    best_idx = jnp.min(jnp.where(eff == best, exp_iota, n_exp),
                       axis=0, keepdims=True)
    score_ref[...] = best
    idx_ref[...] = best_idx.astype(jnp.int32)


def expert_choice_router(x, gate_weight, capacity_factor=1.0,
                         matmul_in_bf16=False):
    """x: [B, S, H] f32; gate_weight: [E, H] f32 (torch nn.Linear layout)."""
    B, S, H = x.shape
    E = gate_weight.shape[0]
    N = B * S
    x_flat = x.reshape(N, H)
    w = gate_weight.T                         # [H, E]

    if matmul_in_bf16:
        # Optional: halves the dominant HBM read traffic of x; changes
        # logits/probs at the ~1e-2 level (numerics tradeoff, off by default).
        x_flat = x_flat.astype(jnp.bfloat16)
        w = w.astype(jnp.bfloat16)

    tn = _token_tile(N, H, itemsize=x_flat.dtype.itemsize)
    grid_n = pl.cdiv(N, tn)

    logits, probs = pl.pallas_call(
        _router_kernel,
        out_shape=(jax.ShapeDtypeStruct((N, E), jnp.float32),
                   jax.ShapeDtypeStruct((N, E), jnp.float32)),
        grid=(grid_n,),
        in_specs=[pl.BlockSpec((tn, H), lambda i: (i, 0)),
                  pl.BlockSpec((H, E), lambda i: (0, 0))],   # weight stays resident
        out_specs=(pl.BlockSpec((tn, E), lambda i: (i, 0)),
                   pl.BlockSpec((tn, E), lambda i: (i, 0))),
        compiler_params=pltpu.CompilerParams(
            dimension_semantics=("parallel",),
            vmem_limit_bytes=_VMEM_LIMIT_BYTES),
    )(x_flat, w)

    tokens_per_expert = max(1, int(N * capacity_factor / E))

    # --- glue: experts choose their top-k tokens (index plumbing, plain JAX) ---
    affinities = probs.T                                                   # [E, N]
    _, expert_token_indices = jax.lax.top_k(affinities, tokens_per_expert)  # [E, k]
    mask_en = jnp.zeros((E, N), jnp.int8).at[
        jnp.arange(E)[:, None], expert_token_indices].set(1)               # [E, N] int8

    ta = _assign_tile(N)
    grid_a = pl.cdiv(N, ta)

    scores, idxs = pl.pallas_call(
        _assign_kernel,
        out_shape=(jax.ShapeDtypeStruct((1, N), jnp.float32),
                   jax.ShapeDtypeStruct((1, N), jnp.int32)),
        grid=(grid_a,),
        in_specs=[pl.BlockSpec((E, ta), lambda i: (0, i)),
                  pl.BlockSpec((E, ta), lambda i: (0, i))],
        out_specs=(pl.BlockSpec((1, ta), lambda i: (0, i)),
                   pl.BlockSpec((1, ta), lambda i: (0, i))),
        compiler_params=pltpu.CompilerParams(
            dimension_semantics=("parallel",),
            vmem_limit_bytes=_VMEM_LIMIT_BYTES),
    )(affinities, mask_en)

    routing_weights = scores.reshape(B, S)
    expert_indices = idxs.reshape(B, S)   # int32 (torch returns int64; values identical)
    aux_outputs = {"router_logits": logits, "router_probs": probs}
    return routing_weights, expert_indices, aux_outputs


# ---------------------------------------------------------------------------
# Pure-JAX references for verification.
# ---------------------------------------------------------------------------
def _router_reference(x, gate_weight):
    B, S, H = x.shape
    xf = x.reshape(-1, H)
    logits = xf @ gate_weight.T
    probs = jax.nn.softmax(logits, axis=-1)
    return logits, probs


def _assign_reference(probs, tokens_per_expert):
    """Vectorized equivalent of the torch assignment loops, applied to probs."""
    N, E = probs.shape
    _, idx = jax.lax.top_k(probs.T, tokens_per_expert)
    mask = (jnp.zeros((E, N), jnp.int8)
            .at[jnp.arange(E)[:, None], idx].set(1).T) != 0
    masked = jnp.where(mask, probs, -jnp.inf)
    any_sel = mask.any(-1)
    eff = jnp.where(any_sel[:, None], masked, probs)
    score = eff.max(-1)
    assigned = jnp.argmax(eff, -1)            # first max == earliest expert wins
    return score, assigned


def _run_and_check(B, S, H, E, capacity_factor, seed, lg_tol):
    key = jax.random.PRNGKey(seed)
    kx, kw = jax.random.split(key)
    x = jax.random.normal(kx, (B, S, H), dtype=jnp.float32)
    # torch nn.Linear default init: U(-1/sqrt(H), 1/sqrt(H)), weight shape [E, H]
    bound = 1.0 / (H ** 0.5)
    gate_weight = jax.random.uniform(kw, (E, H), dtype=jnp.float32,
                                     minval=-bound, maxval=bound)

    fwd = functools.partial(expert_choice_router, capacity_factor=capacity_factor)
    routing_weights, expert_indices, aux = fwd(x, gate_weight)
    jax.block_until_ready((routing_weights, expert_indices,
                           aux["router_logits"], aux["router_probs"]))

    # 1) router matmul + softmax vs pure-JAX reference
    lg_ref, pr_ref = _router_reference(x, gate_weight)
    assert jnp.allclose(aux["router_logits"], lg_ref, atol=lg_tol, rtol=lg_tol)
    assert jnp.allclose(aux["router_probs"], pr_ref, atol=lg_tol, rtol=lg_tol)

    # 2) assignment kernel vs reference assignment computed from the *kernel's*
    #    probs (apples-to-apples on the selection logic)
    N = B * S
    k = max(1, int(N * capacity_factor / E))
    rw_ref, ei_ref = _assign_reference(aux["router_probs"], k)
    assert jnp.allclose(routing_weights, rw_ref.reshape(B, S), atol=1e-6, rtol=1e-6)
    assert jnp.array_equal(expert_indices, ei_ref.reshape(B, S))


if __name__ == "__main__":
    # Small shapes consistent with the module: [batch, seq, hidden], E experts.
    _run_and_check(B=2, S=8, H=32, E=4, capacity_factor=1.0, seed=0, lg_tol=1e-5)
    # Larger shapes that exercise the multi-block tiled grid in both kernels.
    _run_and_check(B=2, S=2048, H=128, E=8, capacity_factor=1.0, seed=0, lg_tol=1e-3)

    print("KERNEL_OK")
</pallas_src>

<mosaic_0001>
module attributes {stable_mosaic.version = 11 : i64} {
  func.func @_router_kernel(%arg0: i32, %arg1: memref<16x32xf32, #tpu.memory_space<vmem>>, %arg2: memref<32x4xf32, #tpu.memory_space<vmem>>, %arg3: memref<16x4xf32, #tpu.memory_space<vmem>>, %arg4: memref<16x4xf32, #tpu.memory_space<vmem>>) attributes {dimension_semantics = [#tpu.dimension_semantics<parallel>], iteration_bounds = array<i64: 1>, scalar_prefetch = 0 : i64, scratch_operands = 0 : i64, tpu.core_type = #tpu.core_type<tc>, window_params = [{transform_indices = @transform_0, window_bounds = array<i64: 16, 32>}, {pipeline_mode = #tpu.pipeline_mode<synchronous>, transform_indices = @transform_1, window_bounds = array<i64: 32, 4>}, {transform_indices = @transform_2, window_bounds = array<i64: 16, 4>}, {transform_indices = @transform_3, window_bounds = array<i64: 16, 4>}]} {
    %c0 = arith.constant 0 : index
    %c0_0 = arith.constant 0 : index
    %0 = vector.load %arg1[%c0, %c0_0] : memref<16x32xf32, #tpu.memory_space<vmem>>, vector<16x32xf32>
    %c0_1 = arith.constant 0 : index
    %c0_2 = arith.constant 0 : index
    %1 = vector.load %arg2[%c0_1, %c0_2] : memref<32x4xf32, #tpu.memory_space<vmem>>, vector<32x4xf32>
    %cst = arith.constant dense<0.000000e+00> : vector<16x4xf32>
    %2 = tpu.matmul %0, %1, %cst {dimension_numbers = #tpu.dot_dimension_numbers<[1], [0], [0], [1], [0, 0, 1, 1], [], []>} : vector<16x32xf32>, vector<32x4xf32>, vector<16x4xf32> -> vector<16x4xf32>
    %c0_3 = arith.constant 0 : index
    %c0_4 = arith.constant 0 : index
    %3 = vector.load %arg3[%c0_3, %c0_4] : memref<16x4xf32, #tpu.memory_space<vmem>>, vector<16x4xf32>
    tpu.vector_store %arg3[%c0_3, %c0_4], %2 {strides = array<i32>} : memref<16x4xf32, #tpu.memory_space<vmem>>, vector<16x4xf32>,
    %cst_5 = arith.constant dense<0xFF800000> : vector<16xf32>
    %4 = vector.multi_reduction <maximumf>, %2, %cst_5 [1] : vector<16x4xf32> to vector<16xf32>
    %5 = vector.shape_cast %4 : vector<16xf32> to vector<16x1xf32>
    %6 = vector.broadcast %5 : vector<16x1xf32> to vector<16x4xf32>
    %7 = arith.subf %2, %6 : vector<16x4xf32>
    %8 = math.exp %7 : vector<16x4xf32>
    %cst_6 = arith.constant dense<0.000000e+00> : vector<16xf32>
    %9 = vector.multi_reduction <add>, %8, %cst_6 [1] : vector<16x4xf32> to vector<16xf32>
    %10 = vector.shape_cast %9 : vector<16xf32> to vector<16x1xf32>
    %11 = tpu.reciprocal %10 : vector<16x1xf32> -> vector<16x1xf32>
    %12 = vector.broadcast %11 : vector<16x1xf32> to vector<16x4xf32>
    %13 = arith.mulf %8, %12 : vector<16x4xf32>
    %c0_7 = arith.constant 0 : index
    %c0_8 = arith.constant 0 : index
    %14 = vector.load %arg4[%c0_7, %c0_8] : memref<16x4xf32, #tpu.memory_space<vmem>>, vector<16x4xf32>
    tpu.vector_store %arg4[%c0_7, %c0_8], %13 {strides = array<i32>} : memref<16x4xf32, #tpu.memory_space<vmem>>, vector<16x4xf32>,
    return
  }
  func.func @transform_0(%arg0: i32) -> (i32, i32) {
    %c0_i32 = arith.constant 0 : i32
    %c0_i32_0 = arith.constant 0 : i32
    return %arg0, %c0_i32 : i32, i32
  }
  func.func @transform_1(%arg0: i32) -> (i32, i32) {
    %c0_i32 = arith.constant 0 : i32
    %c0_i32_0 = arith.constant 0 : i32
    %c0_i32_1 = arith.constant 0 : i32
    return %c0_i32, %c0_i32_0 : i32, i32
  }
  func.func @transform_2(%arg0: i32) -> (i32, i32) {
    %c0_i32 = arith.constant 0 : i32
    %c0_i32_0 = arith.constant 0 : i32
    return %arg0, %c0_i32 : i32, i32
  }
  func.func @transform_3(%arg0: i32) -> (i32, i32) {
    %c0_i32 = arith.constant 0 : i32
    %c0_i32_0 = arith.constant 0 : i32
    return %arg0, %c0_i32 : i32, i32
  }
}

</mosaic_0001>

<llo_original>
// kernel: tpu_custom_call.1
$region0: #{tpu_custom_call.1}
  #allocation0 [shape = 'u32[]', space=smem, size = 0x4, offset = 0x4, fixed_abs, tag = 'smem constant byte address 0x4 - core index']
  #allocation1 [shape = 'u32[144,128]{1,0:T(1,128)}', space=vmem, size = 0x12000, scoped, tag = 'internal scratch']
  %s0 = inlined_call_operand.vmem [shape: f32[16,32], index: 0, kind: input, shape index: {}]
  %s1 = inlined_call_operand.vmem [shape: f32[32,4], index: 1, kind: input, shape index: {}]
  %s2 = inlined_call_operand.vmem [shape: f32[16,4], index: 2, kind: output, shape index: {0}]
  %s3 = inlined_call_operand.vmem [shape: f32[16,4], index: 3, kind: output, shape index: {1}]
  %4 = xla_tuple %s2, %s3
  %s5 = sld [smem:[#allocation0]]
  $region26: #{tpu_custom_call.1} parent=0
    _
  %s7 = ssub.s32 1, %s5
  %s8 = scalar_select 0, %s7, %s5
  // Predicated region
  $region2: #{tpu_custom_call.1} parent=0 // pred_check
    _
  $region3: #{tpu_custom_call.1} parent=0 // pred_check_branch
    %10 = sbr.rel (0) target = $region5
  $region4: #{tpu_custom_call.1} parent=0 // pred_region
    _
  $region5: #{tpu_custom_call.1} parent=0 // pred_fallthru
    _
  // Predicated region
  $region6: #{tpu_custom_call.1} parent=0 // pred_check
    _
  $region7: #{tpu_custom_call.1} parent=0 // pred_check_branch
    %12 = sbr.rel (0) target = $region9
  $region8: #{tpu_custom_call.1} parent=0 // pred_region
    _
  $region9: #{tpu_custom_call.1} parent=0 // pred_fallthru
    _
  %v13 = vld [vmem:[%s0] sm:$0xff]
  %v14 = vld [vmem:[%s0 + $0x8] sm:$0xff]
  %v15 = vld [vmem:[%s1] sm:$0xff]
  %v16 = vld [vmem:[%s1 + $0x8] sm:$0xff]
  %v17 = vld [vmem:[%s1 + $0x10] sm:$0xff]
  %v18 = vld [vmem:[%s1 + $0x18] sm:$0xff]
  %vm19 = vcmask 261120
  %v21 = vsel %vm19, %v13, 0
  %v24 = vsel %vm19, %v14, 0
  %26 = vmatprep.subr.mxu0 0.0
  %27 = vmatpush1.msra.mxu0 0.0
  %28 = vmatprep.subr.mxu0 0.0
  %29 = vmatpush1.msra.mxu0 0.0
  %30 = vmatprep.subr.mxu0 0.0
  %31 = vmatpush1.msra.mxu0 0.0
  %32 = vmatprep.subr.mxu0 0.0
  %33 = vmatpush1.msra.mxu0 0.0
  %34 = vmatprep.subr.mxu0 0.0
  %35 = vmatpush1.msra.mxu0 0.0
  %36 = vmatprep.subr.mxu0 0.0
  %37 = vmatpush1.msra.mxu0 0.0
  %38 = vmatprep.subr.mxu0 0.0
  %39 = vmatpush1.msra.mxu0 0.0
  %40 = vmatprep.subr.mxu0 0.0
  %41 = vmatpush1.msra.mxu0 0.0
  %42 = vmatprep.subr.mxu0 0.0
  %43 = vmatpush1.msra.mxu0 0.0
  %44 = vmatprep.subr.mxu0 0.0
  %45 = vmatpush1.msra.mxu0 0.0
  %46 = vmatprep.subr.mxu0 0.0
  %47 = vmatpush1.msra.mxu0 0.0
  %48 = vmatprep.subr.mxu0 0.0
  %49 = vmatpush1.msra.mxu0 0.0
  %50 = vmatprep.subr.mxu0 0.0
  %51 = vmatpush1.msra.mxu0 %v18
  %52 = vmatprep.subr.mxu0 0.0
  %53 = vmatpush1.msra.mxu0 %v17
  %54 = vmatprep.subr.mxu0 0.0
  %55 = vmatpush1.msra.mxu0 %v16
  %56 = vmatprep.subr.mxu0 0.0
  %57 = vmatpush1.msra.mxu0 %v15
  %58 = vmatprep.subr.mxu0 0.0
  %59 = vmatpush2.msra.mxu0 0.0
  %60 = vmatprep.subr.mxu0 0.0
  %61 = vmatpush2.msra.mxu0 0.0
  %62 = vmatprep.subr.mxu0 0.0
  %63 = vmatpush2.msra.mxu0 0.0
  %64 = vmatprep.subr.mxu0 0.0
  %65 = vmatpush2.msra.mxu0 0.0
  %66 = vmatprep.subr.mxu0 0.0
  %67 = vmatpush2.msra.mxu0 0.0
  %68 = vmatprep.subr.mxu0 0.0
  %69 = vmatpush2.msra.mxu0 0.0
  %70 = vmatprep.subr.mxu0 0.0
  %71 = vmatpush2.msra.mxu0 0.0
  %72 = vmatprep.subr.mxu0 0.0
  %73 = vmatpush2.msra.mxu0 0.0
  %74 = vmatprep.subr.mxu0 0.0
  %75 = vmatpush2.msra.mxu0 0.0
  %76 = vmatprep.subr.mxu0 0.0
  %77 = vmatpush2.msra.mxu0 0.0
  %78 = vmatprep.subr.mxu0 0.0
  %79 = vmatpush2.msra.mxu0 0.0
  %80 = vmatprep.subr.mxu0 0.0
  %81 = vmatpush2.msra.mxu0 0.0
  %82 = vmatprep.subr.mxu0 0.0
  %83 = vmatpush2.msra.mxu0 0.0
  %84 = vmatprep.subr.mxu0 0.0
  %85 = vmatpush2.msra.mxu0 0.0
  %86 = vmatprep.subr.mxu0 0.0
  %87 = vmatpush2.msra.mxu0 0.0
  %88 = vmatprep.subr.mxu0 0.0
  %89 = vmatpush2.msra.mxu0 0.0
  %90 = vmatprep.mubr.f32.mxu0 0.0
  %91 = vmatmul.mubr.f32.gmra.mxu0 %v21
  %v92 = vpop.f32.mrf.mxu0
  %v93 = vadd.f32 0.0, %v92
  %v94 = vpop.f32.mrf.mxu0
  %95 = vmatprep.mubr.f32.mxu0 0.0
  %96 = vmatmul.mubr.f32.gmra.mxu0 %v24
  %v97 = vpop.f32.mrf.mxu0
  %v98 = vadd.f32 0.0, %v97
  %v99 = vpop.f32.mrf.mxu0
  %100 = vdwg.mxu0
  %vm101 = vcmask 31744
  %102 = vst.msk [vmem:[%s2] sm:$0xff] %vm101, %v93
  %103 = vst.msk [vmem:[%s2 + $0x8] sm:$0xff] %vm101, %v98
  %v104 = vsel %vm101, %v93, -inf
  %105 = vmax.xlane.f32.xlu0 %v104
  %v106 = vpop.xlane.xlu0 %105
  %v107 = vsel %vm101, %v98, -inf
  %108 = vmax.xlane.f32.xlu0 %v107
  %v109 = vpop.xlane.xlu0 %108
  %v110 = vsub.f32 %v93, %v106
  %v111 = vsub.f32 %v98, %v109
  %v112 = vmul.f32 %v110, 1.442695
  %v113 = vpow.pop %v112
  %v114 = vmul.f32 %v111, 1.442695
  %v115 = vpow.pop %v114
  %v116 = vsel %vm101, %v113, 0.0
  %117 = vadd.xlane.f32.xlu0 %v116
  %v118 = vpop.xlane.xlu0 %117
  %v119 = vsel %vm101, %v115, 0.0
  %120 = vadd.xlane.f32.xlu0 %v119
  %v121 = vpop.xlane.xlu0 %120
  %v122 = vrcp.pop %v118
  %v123 = vrcp.pop %v121
  %v124 = vmul.f32 %v113, %v122
  %v125 = vmul.f32 %v115, %v123
  %126 = vst.msk [vmem:[%s3] sm:$0xff] %vm101, %v124
  %127 = vst.msk [vmem:[%s3 + $0x8] sm:$0xff] %vm101, %v125
  // Predicated region
  $region10: #{tpu_custom_call.1} parent=0 // pred_check
    _
  $region11: #{tpu_custom_call.1} parent=0 // pred_check_branch
    %129 = sbr.rel (0) target = $region13
  $region12: #{tpu_custom_call.1} parent=0 // pred_region
    _
  $region13: #{tpu_custom_call.1} parent=0 // pred_fallthru
    _
  // Predicated region
  $region14: #{tpu_custom_call.1} parent=0 // pred_check
    _
  $region15: #{tpu_custom_call.1} parent=0 // pred_check_branch
    %131 = sbr.rel (0) target = $region17
  $region16: #{tpu_custom_call.1} parent=0 // pred_region
    _
  $region17: #{tpu_custom_call.1} parent=0 // pred_fallthru
    _
  // Predicated region
  $region18: #{tpu_custom_call.1} parent=0 // pred_check
    _
  $region19: #{tpu_custom_call.1} parent=0 // pred_check_branch
    %133 = sbr.rel (0) target = $region21
  $region20: #{tpu_custom_call.1} parent=0 // pred_region
    _
  $region21: #{tpu_custom_call.1} parent=0 // pred_fallthru
    _
  // Predicated region
  $region22: #{tpu_custom_call.1} parent=0 // pred_check
    _
  $region23: #{tpu_custom_call.1} parent=0 // pred_check_branch
    %135 = sbr.rel (0) target = $region25
  $region24: #{tpu_custom_call.1} parent=0 // pred_region
    _
  $region25: #{tpu_custom_call.1} parent=0 // pred_fallthru
    _

</llo_original>
